<compile_context>
chip_gen: v5e
topology: v5e:2x2
jax: 0.10.0
libtpu: 0.0.40
codegen_flags: <defaults>
</compile_context>

<pallas_src>
import math

import jax
import jax.numpy as jnp
from jax.experimental import pallas as pl
from jax.experimental.pallas import tpu as pltpu

_LANE = 128
_SUBLANE = 8
_MAX_TILE_BYTES = 4 << 20       # per-array block cap (2-4 MiB is the measured sweet spot)
_VMEM_HEADROOM = 16 << 20       # slack on top of the double-buffered block footprint


def _sublane_pack(dtype) -> int:
    """Sublane packing: 8 for 4-byte, 16 for 2-byte, 32 for 1-byte dtypes."""
    itemsize = jnp.dtype(dtype).itemsize
    return max(_SUBLANE, 32 // max(itemsize, 1))


def _vmem_capacity_bytes() -> int:
    try:
        return int(pltpu.get_tpu_info().vmem_capacity_bytes)
    except Exception:
        return 64 << 20         # conservative default (v7x per-TC VMEM)


def _vmem_budget_bytes() -> int:
    # Keep the pipelined working set well under physical VMEM:
    #   v5e/v6e (128 MiB physical) -> 48 MiB budget,  v7x (64 MiB per TC) -> 24 MiB budget.
    return min(_vmem_capacity_bytes() * 3 // 8, 48 << 20)


def _add_bias_kernel(bias_ref, x_ref, o_ref):
    # bias_ref: (1, 1) f32 scalar in SMEM; x_ref / o_ref: lane-dense tile in VMEM.
    # Compute in the promoted output dtype (native bf16 add when everything is bf16).
    b = bias_ref[0, 0].astype(o_ref.dtype)
    o_ref[...] = x_ref[...].astype(o_ref.dtype) + b


def _add_bias_ibp_kernel(bias_ref, l_ref, u_ref, lo_ref, uo_ref):
    b = bias_ref[0, 0].astype(lo_ref.dtype)
    lo_ref[...] = l_ref[...].astype(lo_ref.dtype) + b
    uo_ref[...] = u_ref[...].astype(uo_ref.dtype) + b


def _stream_bias_add(tensors, bias, *, max_tile_bytes=None):
    """Stream `t + bias` for every t in `tensors` (all same shape) through one fused kernel."""
    shape = tensors[0].shape
    for t in tensors[1:]:
        assert t.shape == shape, "all operands must share a shape"

    out_dtype = jnp.result_type(*(t.dtype for t in tensors), bias.dtype)
    n = math.prod(shape)
    if n == 0:
        return tuple(t.astype(out_dtype) for t in tensors)

    in_itemsizes = [jnp.dtype(t.dtype).itemsize for t in tensors]
    out_itemsize = jnp.dtype(out_dtype).itemsize
    max_itemsize = max(max(in_itemsizes), out_itemsize)
    # HBM bytes moved per logical element (all inputs read + all outputs written).
    stream_bytes = sum(in_itemsizes) + len(tensors) * out_itemsize

    # Elements per block: fill the per-generation VMEM budget (double-buffered), cap 4 MiB/array.
    blk_elems = _vmem_budget_bytes() // (2 * stream_bytes)
    blk_elems = min(blk_elems, _MAX_TILE_BYTES // max_itemsize)
    if max_tile_bytes is not None:
        blk_elems = min(blk_elems, max(max_tile_bytes // max_itemsize, _LANE))
    blk_elems = max(blk_elems, _SUBLANE * _LANE)

    bias_smem = bias.reshape(1, 1).astype(jnp.float32)
    bias_spec = pl.BlockSpec((1, 1), lambda i: (0, 0), memory_space=pltpu.SMEM)

    if n % _LANE == 0:
        # Zero-copy lane-dense (rows, 128) slab; only needs n to be a lane multiple.
        sub = max(max(_sublane_pack(t.dtype) for t in tensors), _sublane_pack(out_dtype))
        rows = n // _LANE
        tr = max((blk_elems // _LANE) // sub * sub, sub)
        tr = min(tr, rows)                      # tr == rows (full dim) is always legal
        grid = (pl.cdiv(rows, tr),)
        tile_spec = pl.BlockSpec((tr, _LANE), lambda i: (i, 0))
        flat_shape = (rows, _LANE)
        block_elems = tr * _LANE
    else:
        # Ragged sizes: stream the flat 1-D view; Pallas masks the partial final block,
        # so no pad / slice (i.e. no extra HBM passes) are needed.
        blk = max((blk_elems // _LANE) * _LANE, _LANE)
        if blk >= n:
            blk = n                             # single block == full dim, always legal
        grid = (pl.cdiv(n, blk),)
        tile_spec = pl.BlockSpec((blk,), lambda i: (i,))
        flat_shape = (n,)
        block_elems = blk

    operands = [t.reshape(flat_shape) for t in tensors]
    out_shape = tuple(jax.ShapeDtypeStruct(flat_shape, out_dtype) for _ in tensors)

    footprint = 2 * stream_bytes * block_elems          # double-buffered in+out blocks
    vmem_limit = int(min(_vmem_capacity_bytes(), footprint + _VMEM_HEADROOM))

    kernel = _add_bias_kernel if len(tensors) == 1 else _add_bias_ibp_kernel

    outs = pl.pallas_call(
        kernel,
        out_shape=out_shape,
        grid_spec=pltpu.PrefetchScalarGridSpec(
            num_scalar_prefetch=0,
            grid=grid,
            in_specs=[bias_spec] + [tile_spec] * len(tensors),
            out_specs=tuple(tile_spec for _ in tensors),
        ),
        compiler_params=pltpu.CompilerParams(
            # Single "parallel" streaming axis: v7x may shard it across both TensorCores;
            # on v5e/v6e it is a plain sequential double-buffered pipeline.
            dimension_semantics=("parallel",),
            vmem_limit_bytes=vmem_limit,
        ),
        cost_estimate=pl.CostEstimate(
            flops=len(tensors) * n,
            transcendentals=0,
            bytes_accessed=n * stream_bytes,
        ),
    )(bias_smem, *operands)

    return tuple(o.reshape(shape) for o in outs)


def add_param_i(x: jax.Array, bias: jax.Array, *, max_tile_bytes=None) -> jax.Array:
    """Equivalent of Add_ParamI.forward: x + bias (bias: learnable scalar, shape (1,))."""
    (out,) = _stream_bias_add((x,), bias, max_tile_bytes=max_tile_bytes)
    return out


def add_param_i_ibp(l: jax.Array, u: jax.Array, bias: jax.Array, *, max_tile_bytes=None):
    """Equivalent of Add_ParamI.ibp_forward: (l + bias, u + bias), fused in one pallas_call."""
    lo, uo = _stream_bias_add((l, u), bias, max_tile_bytes=max_tile_bytes)
    return lo, uo


if __name__ == "__main__":
    key = jax.random.PRNGKey(0)
    k1, k2, k3, k4 = jax.random.split(key, 4)

    # Small NCHW input consistent with a conv-style feature map.
    x = jax.random.normal(k1, (2, 4, 16, 16), dtype=jnp.float32)

    # Parameter init matches nn.Parameter(torch.zeros(1)).
    bias = jnp.zeros((1,), dtype=jnp.float32)
    out = jax.block_until_ready(add_param_i(x, bias))
    assert out.shape == x.shape and out.dtype == x.dtype
    assert jnp.allclose(out, x, atol=1e-6)

    # Non-zero bias.
    bias2 = jnp.full((1,), 0.5, dtype=jnp.float32)
    out2 = jax.block_until_ready(add_param_i(x, bias2))
    assert jnp.allclose(out2, x + 0.5, atol=1e-6)

    # Multiple grid steps + a partial boundary block (force small tiles to exercise it).
    x_big = jax.random.normal(k2, (4, 32, 56, 56), dtype=jnp.float32)
    out_big = jax.block_until_ready(add_param_i(x_big, bias2, max_tile_bytes=64 * 1024))
    assert jnp.allclose(out_big, x_big + 0.5, atol=1e-6)

    # bf16 x + bf16 bias -> native bf16 add; 40 rows is NOT a multiple of the bf16 sublane
    # packing (16) and the last grid block is partial (8 valid rows).
    x_bf = jax.random.normal(k3, (5, 8, 128), dtype=jnp.bfloat16)
    bias_bf = jnp.full((1,), 0.25, dtype=jnp.bfloat16)
    out_bf = jax.block_until_ready(add_param_i(x_bf, bias_bf, max_tile_bytes=8 * 1024))
    assert out_bf.dtype == jnp.bfloat16
    ref_bf = (x_bf.astype(jnp.float32) + 0.25).astype(jnp.bfloat16)
    assert jnp.allclose(out_bf.astype(jnp.float32), ref_bf.astype(jnp.float32), atol=0.05)

    # Ragged (not 128-aligned) element count -> zero-copy flat 1-D path (no pad / slice).
    x_odd = jax.random.normal(k4, (3, 5, 7, 11), dtype=jnp.float32)
    out_odd = jax.block_until_ready(add_param_i(x_odd, bias2))
    assert jnp.allclose(out_odd, x_odd + 0.5, atol=1e-6)
    # Same shape forced through multiple 1-D blocks (masked ragged tail in the final block).
    out_odd2 = jax.block_until_ready(add_param_i(x_odd, bias2, max_tile_bytes=4 * 1024))
    assert jnp.allclose(out_odd2, x_odd + 0.5, atol=1e-6)

    # Fused IBP path.
    l_, u_ = jax.block_until_ready(add_param_i_ibp(x - 0.1, x + 0.1, bias2))
    assert jnp.allclose(l_, x - 0.1 + 0.5, atol=1e-6)
    assert jnp.allclose(u_, x + 0.1 + 0.5, atol=1e-6)

    print("KERNEL_OK")
</pallas_src>

<mosaic_0001>
module attributes {stable_mosaic.version = 11 : i64} {
  func.func @_add_bias_kernel(%arg0: i32, %arg1: memref<1x1xf32, #tpu.memory_space<smem>>, %arg2: memref<16x128xf32, #tpu.memory_space<vmem>>, %arg3: memref<16x128xf32, #tpu.memory_space<vmem>>) attributes {dimension_semantics = [#tpu.dimension_semantics<parallel>], iteration_bounds = array<i64: 1>, scalar_prefetch = 0 : i64, scratch_operands = 0 : i64, tpu.core_type = #tpu.core_type<tc>, window_params = [{transform_indices = @transform_0, window_bounds = array<i64: 1, 1>}, {transform_indices = @transform_1, window_bounds = array<i64: 16, 128>}, {transform_indices = @transform_2, window_bounds = array<i64: 16, 128>}]} {
    %c0 = arith.constant 0 : index
    %c0_0 = arith.constant 0 : index
    %0 = memref.load %arg1[%c0, %c0_0] : memref<1x1xf32, #tpu.memory_space<smem>>
    %c0_1 = arith.constant 0 : index
    %c0_2 = arith.constant 0 : index
    %1 = vector.load %arg2[%c0_1, %c0_2] : memref<16x128xf32, #tpu.memory_space<vmem>>, vector<16x128xf32>
    %2 = vector.broadcast %0 : f32 to vector<16x128xf32>
    %3 = arith.addf %1, %2 : vector<16x128xf32>
    %c0_3 = arith.constant 0 : index
    %c0_4 = arith.constant 0 : index
    %4 = vector.load %arg3[%c0_3, %c0_4] : memref<16x128xf32, #tpu.memory_space<vmem>>, vector<16x128xf32>
    tpu.vector_store %arg3[%c0_3, %c0_4], %3 {strides = array<i32>} : memref<16x128xf32, #tpu.memory_space<vmem>>, vector<16x128xf32>,
    return
  }
  func.func @transform_0(%arg0: i32) -> (i32, i32) {
    %c0_i32 = arith.constant 0 : i32
    %c0_i32_0 = arith.constant 0 : i32
    %c0_i32_1 = arith.constant 0 : i32
    return %c0_i32, %c0_i32_0 : i32, i32
  }
  func.func @transform_1(%arg0: i32) -> (i32, i32) {
    %c0_i32 = arith.constant 0 : i32
    %c0_i32_0 = arith.constant 0 : i32
    return %arg0, %c0_i32 : i32, i32
  }
  func.func @transform_2(%arg0: i32) -> (i32, i32) {
    %c0_i32 = arith.constant 0 : i32
    %c0_i32_0 = arith.constant 0 : i32
    return %arg0, %c0_i32 : i32, i32
  }
}

</mosaic_0001>

<llo_original>
// kernel: tpu_custom_call.1
$region0: #{tpu_custom_call.1}
  #allocation0 [shape = 'u32[]', space=smem, size = 0x4, offset = 0x4, fixed_abs, tag = 'smem constant byte address 0x4 - core index']
  #allocation1 [shape = 'u32[72,128]{1,0:T(1,128)}', space=vmem, size = 0x9000, scoped, tag = 'internal scratch']
  #allocation2 [shape = 'f32[1,1]{1,0:T(1,128)S(6)}', space=smem, size = 0x200, scoped, tag = 'scoped memory for tpu_custom_call.1']
  %s0 = inlined_call_operand.<no memory space> [shape: f32[1,1], index: 0, kind: input, shape index: {}]
  %s1 = inlined_call_operand.hbm [shape: f32[16,128], index: 1, kind: input, shape index: {}]
  %s2 = inlined_call_operand.hbm [shape: f32[16,128], index: 2, kind: output, shape index: {}]
  %s3 = sld [smem:[#allocation0]]
  $region22: #{tpu_custom_call.1} parent=0
    _
  %s5 = ssub.s32 1, %s3
  %s6 = scalar_select 0, %s5, %s3
  %7 = sst [smem:[#allocation2]] %s0
  $region1: #{tpu_custom_call.1} parent=0
    #allocation3 [shape = 'u8[8192]{0}', space=vmem, size = 0x2000, scoped, tag = 'input window, operand 1, single buffered']
    #allocation4 [shape = 's32[1]{0}', space=sflag, size = 0x4, scoped, tag = 'scoped memory for tpu_custom_call.1']
    #allocation5 [shape = 's32[1]{0}', space=sflag, size = 0x4, scoped, tag = 'scoped memory for tpu_custom_call.1']
    #allocation6 [shape = 'u8[8192]{0}', space=vmem, size = 0x2000, scoped, tag = 'output window, operand 0, single buffered']
    %8 = vsyncpa [#allocation4], 0
    %9 = vsyncpa [#allocation5], 0
    // Predicated region
    $region2: #{tpu_custom_call.1} parent=1 // pred_check
      _
    $region3: #{tpu_custom_call.1} parent=1 // pred_check_branch
      %11 = sbr.rel (0) target = $region5
    $region4: #{tpu_custom_call.1} parent=1 // pred_region
      _
    $region5: #{tpu_custom_call.1} parent=1 // pred_fallthru
      _
    // Predicated region
    $region6: #{tpu_custom_call.1} parent=1 // pred_check
      _
    $region7: #{tpu_custom_call.1} parent=1 // pred_check_branch
      %13 = sbr.rel (0) target = $region9
    $region8: #{tpu_custom_call.1} parent=1 // pred_region
      %15 = vsyncadd [#allocation4], 0
      %s16 = sshll.u32 %s1, 4
      %s17 = int_to_ptr.hbm [resolvable:$true] %s16
      %s18 = sshll.u32 [#allocation3], 4
      %s19 = int_to_ptr.vmem [resolvable:$true] %s18
      %24 = dma.hbm_to_vmem [thread:$0]  %s17, 256, %s19, [#allocation4], 128, 128, 8
    $region9: #{tpu_custom_call.1} parent=1 // pred_fallthru
      _
    // Predicated region
    $region10: #{tpu_custom_call.1} parent=1 // pred_check
      _
    $region11: #{tpu_custom_call.1} parent=1 // pred_check_branch
      %26 = sbr.rel (0) target = $region13
    $region12: #{tpu_custom_call.1} parent=1 // pred_region
      %28 = dma.done [#allocation4], 256
    $region13: #{tpu_custom_call.1} parent=1 // pred_fallthru
      _
    %s29 = sld [smem:[#allocation2]]
    %v30 = vld [vmem:[#allocation3] sm:$0xff]
    %v31 = vld [vmem:[#allocation3 + $0x8] sm:$0xff]
    %v32 = vstv %s29
    %v33 = vadd.f32 %v30, %v32
    %v34 = vadd.f32 %v31, %v32
    %35 = vst [vmem:[#allocation6] sm:$0xff] %v33
    %36 = vst [vmem:[#allocation6 + $0x8] sm:$0xff] %v34
    // Predicated region
    $region14: #{tpu_custom_call.1} parent=1 // pred_check
      _
    $region15: #{tpu_custom_call.1} parent=1 // pred_check_branch
      %38 = sbr.rel (0) target = $region17
    $region16: #{tpu_custom_call.1} parent=1 // pred_region
      %40 = vsyncadd [#allocation5], 0
      %s41 = sshll.u32 [#allocation6], 4
      %s42 = int_to_ptr.vmem [resolvable:$true] %s41
      %s43 = sshll.u32 %s2, 4
      %s44 = int_to_ptr.hbm [resolvable:$true] %s43
      %49 = dma.vmem_to_hbm [thread:$0]  %s42, 256, %s44, [#allocation5], 128, 128, 8
    $region17: #{tpu_custom_call.1} parent=1 // pred_fallthru
      _
    // Predicated region
    $region18: #{tpu_custom_call.1} parent=1 // pred_check
      _
    $region19: #{tpu_custom_call.1} parent=1 // pred_check_branch
      %51 = sbr.rel (0) target = $region21
    $region20: #{tpu_custom_call.1} parent=1 // pred_region
      %53 = dma.done [#allocation5], 256
    $region21: #{tpu_custom_call.1} parent=1 // pred_fallthru
      _
    %54 = vsyncpa [#allocation4], 1
    %55 = vsyncpa [#allocation5], 1

</llo_original>
